<compile_context>
chip_gen: v7x
topology: tpu7x:2x2x1
jax: 0.10.0
libtpu: 0.0.40
codegen_flags: <defaults>
</compile_context>

<pallas_src>
import math

import jax
import jax.numpy as jnp
from jax.experimental import pallas as pl
from jax.experimental.pallas import tpu as pltpu


def _linear_kernel(x_ref, w_ref, b_ref, o_ref):
    # One (tm, Kp) x (Kp, Np) MXU matmul per grid step; f32 accumulation,
    # f32 bias add, cast on store.
    acc = jnp.dot(x_ref[...], w_ref[...], preferred_element_type=jnp.float32)
    o_ref[...] = (acc + b_ref[...]).astype(o_ref.dtype)


def _round_up(x, m):
    return ((x + m - 1) // m) * m


def _pack_factor(K, N, dtype_bytes=4, wblk_cap_bytes=4 << 20):
    """Smallest P making both P*K and P*N multiples of 128.

    Only backs off (halves) when the block-diagonal weight would blow the VMEM
    budget AND the halved P keeps both packed dims lane-aligned; otherwise we
    keep alignment (masked vst.msk partial stores cost more than a larger
    resident weight at these sizes).
    """
    p = math.lcm(128 // math.gcd(K, 128), 128 // math.gcd(N, 128))
    while (p > 1
           and (p * K) * (p * N) * dtype_bytes > wblk_cap_bytes
           and p % 2 == 0
           and ((p // 2) * K) % 128 == 0
           and ((p // 2) * N) % 128 == 0):
        p //= 2
    return max(p, 1)


def make_time_feature_embedding(weight, bias, *, compute_dtype=None,
                                out_dtype=None, tm_max=512, min_grid_steps=2):
    """Build y = x @ weight + bias with packed params hoisted out of the call path.

    weight: [K, N]   (transpose of PyTorch nn.Linear.weight, which is [N, K])
    bias:   [N]
    compute_dtype: optional dtype for the MXU inputs (e.g. jnp.bfloat16 on
                   v5e); accumulation and bias add stay f32.
    out_dtype:     output dtype (default: dtype of x); bf16 halves the
                   dominant output HBM write on all generations.
    tm_max:        max packed-row tile; 512 is safe on v5e/v6e/v7x scoped
                   VMEM defaults, 1024 OK on v6e.
    """
    K, N = weight.shape
    P = _pack_factor(K, N)
    Kp, Np = P * K, P * N
    assert Kp % 128 == 0 and Np % 128 == 0, (Kp, Np)  # unmasked vst guaranteed

    # Block-diagonal weight / tiled bias built once (not per call).
    if P > 1:
        w_blk = jnp.kron(jnp.eye(P, dtype=weight.dtype), weight)   # [Kp, Np]
        b_blk = jnp.tile(bias, P).reshape(1, Np)
    else:
        w_blk = weight
        b_blk = bias.reshape(1, Np)
    if compute_dtype is not None:
        w_blk = w_blk.astype(compute_dtype)
    b_blk = b_blk.astype(jnp.float32)          # bias added in f32 regardless

    def apply(x, *, packed_output=False):
        *lead, Kx = x.shape
        assert Kx == K, (Kx, K)
        odt = x.dtype if out_dtype is None else out_dtype

        M = 1
        for d in lead:
            M *= d

        # ---- balanced tiling with >= min_grid_steps (even) grid steps ----
        Mp = pl.cdiv(M, P)                                   # packed rows needed
        num_tiles = _round_up(max(min_grid_steps, pl.cdiv(Mp, tm_max)),
                              min_grid_steps)
        tm = _round_up(pl.cdiv(Mp, num_tiles), 8)            # sublane-aligned
        Mp_pad = num_tiles * tm
        M_pad = Mp_pad * P

        # TODO(synk): if the caller can hand over the packed [Mp, Kp] slab (or
        # x already flattened/padded), drop this pre-pass — it is its own
        # relayout kernel (~1/9 of total HBM bytes for this op).
        x2d = x.reshape(M, K)
        if M_pad != M:
            x2d = jnp.pad(x2d, ((0, M_pad - M), (0, 0)))
        x_packed = x2d.reshape(Mp_pad, Kp)
        if compute_dtype is not None:
            x_packed = x_packed.astype(compute_dtype)

        y_packed = pl.pallas_call(
            _linear_kernel,
            out_shape=jax.ShapeDtypeStruct((Mp_pad, Np), odt),
            grid_spec=pltpu.PrefetchScalarGridSpec(
                num_scalar_prefetch=0,
                grid=(num_tiles,),
                in_specs=[
                    pl.BlockSpec((tm, Kp), lambda i: (i, 0)),   # x marches over M
                    # Invariant operands; if VMEM ever gets tight (bigger N /
                    # tm / v7x), add pipeline_mode=pl.Buffered(1) on these.
                    pl.BlockSpec((Kp, Np), lambda i: (0, 0)),   # weight resident
                    pl.BlockSpec((1, Np), lambda i: (0, 0)),    # bias resident
                ],
                out_specs=pl.BlockSpec((tm, Np), lambda i: (i, 0)),
            ),
            compiler_params=pltpu.CompilerParams(
                dimension_semantics=("parallel",),   # v7x dual-TC sharding
            ),
        )(x_packed, w_blk, b_blk)

        if packed_output:
            # Lane-dense [Mp_pad, Np] slab. Rows >= ceil(M/P) are padding; the
            # padded positions inside the last valid row hold just the bias.
            # Consumers that can work on this layout skip the relayout below.
            return y_packed

        # TODO(synk): this reshape is a physical relayout pass on TPU (minor
        # dim 1024 -> 32), roughly doubling wall time for this memory-bound
        # op; fuse the downstream embedding sum into this kernel (or consume
        # packed_output) to avoid the round trip.
        y = y_packed.reshape(M_pad, N)[:M]
        return y.reshape(*lead, N)

    return apply


def time_feature_embedding(x, weight, bias, **kwargs):
    """One-shot convenience wrapper (re-packs the params on every call)."""
    return make_time_feature_embedding(weight, bias, **kwargs)(x)


if __name__ == "__main__":
    # Module config: time_feature_dim=4, out_dim=32; input [batch=2, seq=8, 4].
    time_feature_dim = 4
    out_dim = 32
    batch, seq = 2, 8

    key = jax.random.PRNGKey(0)
    kx, kw, kb = jax.random.split(key, 3)

    x = jax.random.normal(kx, (batch, seq, time_feature_dim), dtype=jnp.float32)
    # Deterministic param init (Kaiming-uniform-ish bound like PyTorch Linear).
    bound = 1.0 / (time_feature_dim ** 0.5)
    # weight stored as [K, N] (transpose of torch's [out_dim, time_feature_dim]).
    weight = jax.random.uniform(
        kw, (time_feature_dim, out_dim), minval=-bound, maxval=bound,
        dtype=jnp.float32)
    bias = jax.random.uniform(
        kb, (out_dim,), minval=-bound, maxval=bound, dtype=jnp.float32)

    # Packed params built once; every call reuses them.
    embed = make_time_feature_embedding(weight, bias)

    y = embed(x)
    jax.block_until_ready(y)
    y_ref = x @ weight + bias
    assert y.shape == (batch, seq, out_dim)
    assert jnp.allclose(y, y_ref, atol=1e-5, rtol=1e-5)

    # Larger, non-aligned M: exercises the balanced multi-tile grid + tail pad.
    x_big = jax.random.normal(key, (3, 1234, time_feature_dim), dtype=jnp.float32)
    y_big = embed(x_big)
    jax.block_until_ready(y_big)
    assert jnp.allclose(y_big, x_big @ weight + bias, atol=1e-5, rtol=1e-5)

    # bf16 matmul-input path (recommended on v5e); f32 accumulation retained.
    embed_bf16 = make_time_feature_embedding(weight, bias,
                                             compute_dtype=jnp.bfloat16)
    y_bf16 = embed_bf16(x_big)
    jax.block_until_ready(y_bf16)
    assert jnp.allclose(y_bf16, x_big @ weight + bias, atol=5e-2, rtol=5e-2)

    # Packed-output path (consumer keeps the lane-dense layout; no relayout).
    y_pk = embed(x, packed_output=True)
    jax.block_until_ready(y_pk)
    M = batch * seq
    y_from_pk = y_pk.reshape(-1, out_dim)[:M].reshape(batch, seq, out_dim)
    assert jnp.allclose(y_from_pk, y_ref, atol=1e-5, rtol=1e-5)

    print("KERNEL_OK")
</pallas_src>

<mosaic_0001>
module attributes {stable_mosaic.version = 11 : i64} {
  func.func @_linear_kernel(%arg0: i32, %arg1: memref<8x128xf32, #tpu.memory_space<vmem>>, %arg2: memref<128x1024xf32, #tpu.memory_space<vmem>>, %arg3: memref<1x1024xf32, #tpu.memory_space<vmem>>, %arg4: memref<8x1024xf32, #tpu.memory_space<vmem>>) attributes {dimension_semantics = [#tpu.dimension_semantics<parallel>], iteration_bounds = array<i64: 2>, scalar_prefetch = 0 : i64, scratch_operands = 0 : i64, tpu.core_type = #tpu.core_type<tc>, window_params = [{transform_indices = @transform_0, window_bounds = array<i64: 8, 128>}, {pipeline_mode = #tpu.pipeline_mode<synchronous>, transform_indices = @transform_1, window_bounds = array<i64: 128, 1024>}, {pipeline_mode = #tpu.pipeline_mode<synchronous>, transform_indices = @transform_2, window_bounds = array<i64: 1, 1024>}, {transform_indices = @transform_3, window_bounds = array<i64: 8, 1024>}]} {
    %c0 = arith.constant 0 : index
    %c0_0 = arith.constant 0 : index
    %0 = vector.load %arg1[%c0, %c0_0] : memref<8x128xf32, #tpu.memory_space<vmem>>, vector<8x128xf32>
    %c0_1 = arith.constant 0 : index
    %c0_2 = arith.constant 0 : index
    %1 = vector.load %arg2[%c0_1, %c0_2] : memref<128x1024xf32, #tpu.memory_space<vmem>>, vector<128x1024xf32>
    %cst = arith.constant dense<0.000000e+00> : vector<8x1024xf32>
    %2 = tpu.matmul %0, %1, %cst {dimension_numbers = #tpu.dot_dimension_numbers<[1], [0], [0], [1], [0, 0, 1, 1], [], []>} : vector<8x128xf32>, vector<128x1024xf32>, vector<8x1024xf32> -> vector<8x1024xf32>
    %c0_3 = arith.constant 0 : index
    %c0_4 = arith.constant 0 : index
    %3 = vector.load %arg3[%c0_3, %c0_4] : memref<1x1024xf32, #tpu.memory_space<vmem>>, vector<1x1024xf32>
    %4 = vector.broadcast %3 : vector<1x1024xf32> to vector<8x1024xf32>
    %5 = arith.addf %2, %4 : vector<8x1024xf32>
    %c0_5 = arith.constant 0 : index
    %c0_6 = arith.constant 0 : index
    %6 = vector.load %arg4[%c0_5, %c0_6] : memref<8x1024xf32, #tpu.memory_space<vmem>>, vector<8x1024xf32>
    tpu.vector_store %arg4[%c0_5, %c0_6], %5 {strides = array<i32>} : memref<8x1024xf32, #tpu.memory_space<vmem>>, vector<8x1024xf32>,
    return
  }
  func.func @transform_0(%arg0: i32) -> (i32, i32) {
    %c0_i32 = arith.constant 0 : i32
    %c0_i32_0 = arith.constant 0 : i32
    return %arg0, %c0_i32 : i32, i32
  }
  func.func @transform_1(%arg0: i32) -> (i32, i32) {
    %c0_i32 = arith.constant 0 : i32
    %c0_i32_0 = arith.constant 0 : i32
    %c0_i32_1 = arith.constant 0 : i32
    return %c0_i32, %c0_i32_0 : i32, i32
  }
  func.func @transform_2(%arg0: i32) -> (i32, i32) {
    %c0_i32 = arith.constant 0 : i32
    %c0_i32_0 = arith.constant 0 : i32
    %c0_i32_1 = arith.constant 0 : i32
    return %c0_i32, %c0_i32_0 : i32, i32
  }
  func.func @transform_3(%arg0: i32) -> (i32, i32) {
    %c0_i32 = arith.constant 0 : i32
    %c0_i32_0 = arith.constant 0 : i32
    return %arg0, %c0_i32 : i32, i32
  }
}

</mosaic_0001>

<llo_original>
// kernel: tpu_custom_call.1
$region0: #{tpu_custom_call.1}
  #allocation0 [shape = 'u32[]', space=smem, size = 0x4, offset = 0x4, fixed_abs, tag = 'smem constant byte address 0x4 - core index']
  #allocation1 [shape = 'u32[144,128]{1,0:T(1,128)}', space=vmem, size = 0x12000, scoped, tag = 'internal scratch']
  %s0 = inlined_call_operand.hbm [shape: f32[16,128], index: 0, kind: input, shape index: {}]
  %s1 = inlined_call_operand.hbm [shape: f32[128,1024], index: 1, kind: input, shape index: {}]
  %s2 = inlined_call_operand.hbm [shape: f32[1,1024], index: 2, kind: input, shape index: {}]
  %s3 = inlined_call_operand.hbm [shape: f32[16,1024], index: 3, kind: output, shape index: {}]
  %s4 = sld [smem:[#allocation0]]
  $region57: #{tpu_custom_call.1} parent=0
    _
  %s6 = ssub.s32 1, %s4
  %s7 = scalar_select 0, %s6, %s4
  $region1: #{tpu_custom_call.1} parent=0
    #allocation2 [shape = 'u8[8192]{0}', space=vmem, size = 0x2000, scoped, tag = 'input window, operand 0']
    #allocation3 [shape = 's32[2]{0}', space=sflag, size = 0x8, scoped, tag = 'scoped memory for tpu_custom_call.1']
    #allocation4 [shape = 's32[2]{0}', space=sflag, size = 0x8, scoped, tag = 'scoped memory for tpu_custom_call.1']
    #allocation5 [shape = 'u8[524288]{0}', space=vmem, size = 0x80000, scoped, tag = 'input window, operand 1, single buffered']
    #allocation6 [shape = 's32[1]{0}', space=sflag, size = 0x4, scoped, tag = 'scoped memory for tpu_custom_call.1']
    #allocation7 [shape = 'u8[4096]{0}', space=vmem, size = 0x1000, scoped, tag = 'input window, operand 2, single buffered']
    #allocation8 [shape = 'u8[65536]{0}', space=vmem, size = 0x10000, scoped, tag = 'output window, operand 0']
    %8 = vsyncpa [#allocation3], 0
    %s9 = scalar_lea.sflag [#allocation3], 1
    %10 = vsyncpa %s9, 0
    %11 = vsyncpa [#allocation6], 0
    %12 = vsyncpa [#allocation4], 0
    %s13 = scalar_lea.sflag [#allocation4], 1
    %14 = vsyncpa %s13, 0
    loop: start=0, step=1, limit=4
    $region2: #{tpu_custom_call.1} parent=1 // loop_pre_header
      _
    $region3: #{tpu_custom_call.1} parent=1 // loop_header
      %s16 = sphi 0, %s20
      %p17 = scmp.ge.s32.totalorder %s16, 4
      %s26 = sphi 0, %s28
      %s29 = sphi 0, %s26
      %s30 = sphi 0, %s29
      %s46 = sphi 0, %s30
      %s50 = sphi 0, %s50
      %s52 = sphi 0, %s50
      %s53 = sphi 0, %s52
      %s67 = sphi 0, %s53
      %s71 = sphi 0, %s71
      %s73 = sphi 0, %s71
      %s74 = sphi 0, %s73
      %s88 = sphi 0, %s74
      %s94 = sphi 0, %s96
      %s97 = sphi 0, %s94
      %s98 = sphi 0, %s97
      %s114 = sphi 0, %s98
    $region4: #{tpu_custom_call.1} parent=1 // loop_header_branch
      %19 = sbr.rel (%p17) target = $region8
    $region5: #{tpu_custom_call.1} parent=1 // loop_body
      %s21 = ssub.s32 %s16, 1
      %s22 = ssub.s32 %s16, 2
      %s23 = sadd.s32 %s16, 1
      %s24 = ssub.s32 %s16, %s23
      %p25 = scmp.eq.s32.totalorder %s24, 0
      %s27 = sadd.s32 %s26, 1
      %s28 = scalar_select %p25, %s26, %s27
      %p31 = pneg %p25
      %p32 = scmp.eq.s32.totalorder %s16, 1
      %p33 = por %p31, %p32
      %p34 = scmp.ne.s32.totalorder %s26, %s29
      %p35 = scmp.eq.s32.totalorder %s16, 0
      %p36 = por %p34, %p35
      %p37 = scmp.ne.s32.totalorder %s26, %s29
      %p38 = scmp.eq.s32.totalorder %s21, 1
      %p39 = por %p37, %p38
      %p40 = scmp.ne.s32.totalorder %s29, %s30
      %p41 = scmp.eq.s32.totalorder %s21, 0
      %p42 = por %p40, %p41
      %p43 = scmp.ne.s32.totalorder %s29, %s30
      %p44 = scmp.eq.s32.totalorder %s22, 1
      %p45 = por %p43, %p44
      %p47 = scmp.ne.s32.totalorder %s30, %s46
      %p48 = scmp.eq.s32.totalorder %s22, 0
      %p49 = por %p47, %p48
      %s51 = sadd.s32 %s50, 1
      %p54 = scmp.eq.s32.totalorder %s16, 1
      %p55 = scmp.ne.s32.totalorder %s50, %s52
      %p56 = scmp.eq.s32.totalorder %s16, 0
      %p57 = por %p55, %p56
      %p58 = scmp.ne.s32.totalorder %s50, %s52
      %p59 = scmp.eq.s32.totalorder %s21, 1
      %p60 = por %p58, %p59
      %p61 = scmp.ne.s32.totalorder %s52, %s53
      %p62 = scmp.eq.s32.totalorder %s21, 0
      %p63 = por %p61, %p62
      %p64 = scmp.ne.s32.totalorder %s52, %s53
      %p65 = scmp.eq.s32.totalorder %s22, 1
      %p66 = por %p64, %p65
      %p68 = scmp.ne.s32.totalorder %s53, %s67
      %p69 = scmp.eq.s32.totalorder %s22, 0
      %p70 = por %p68, %p69
      %s72 = sadd.s32 %s71, 1
      %p75 = scmp.eq.s32.totalorder %s16, 1
      %p76 = scmp.ne.s32.totalorder %s71, %s73
      %p77 = scmp.eq.s32.totalorder %s16, 0
      %p78 = por %p76, %p77
      %p79 = scmp.ne.s32.totalorder %s71, %s73
      %p80 = scmp.eq.s32.totalorder %s21, 1
      %p81 = por %p79, %p80
      %p82 = scmp.ne.s32.totalorder %s73, %s74
      %p83 = scmp.eq.s32.totalorder %s21, 0
      %p84 = por %p82, %p83
      %p85 = scmp.ne.s32.totalorder %s73, %s74
      %p86 = scmp.eq.s32.totalorder %s22, 1
      %p87 = por %p85, %p86
      %p89 = scmp.ne.s32.totalorder %s74, %s88
      %p90 = scmp.eq.s32.totalorder %s22, 0
      %p91 = por %p89, %p90
      %s92 = ssub.s32 %s16, %s23
      %p93 = scmp.eq.s32.totalorder %s92, 0
      %s95 = sadd.s32 %s94, 1
      %s96 = scalar_select %p93, %s94, %s95
      %p99 = pneg %p93
      %p100 = scmp.eq.s32.totalorder %s16, 1
      %p101 = por %p99, %p100
      %p102 = scmp.ne.s32.totalorder %s94, %s97
      %p103 = scmp.eq.s32.totalorder %s16, 0
      %p104 = por %p102, %p103
      %p105 = scmp.ne.s32.totalorder %s94, %s97
      %p106 = scmp.eq.s32.totalorder %s21, 1
      %p107 = por %p105, %p106
      %p108 = scmp.ne.s32.totalorder %s97, %s98
      %p109 = scmp.eq.s32.totalorder %s21, 0
      %p110 = por %p108, %p109
      %p111 = scmp.ne.s32.totalorder %s97, %s98
      %p112 = scmp.eq.s32.totalorder %s22, 1
      %p113 = por %p111, %p112
      %p115 = scmp.ne.s32.totalorder %s98, %s114
      %p116 = scmp.eq.s32.totalorder %s22, 0
      %p117 = por %p115, %p116
      %p118 = scmp.le.s32.totalorder 1, %s16
      %p119 = scmp.lt.s32.totalorder %s16, 3
      %p120 = pnand %p118, %p119
      %p121 = pneg %p120
      // Predicated region
      $region9: #{tpu_custom_call.1} parent=5 // pred_check
        _
      $region10: #{tpu_custom_call.1} parent=5 // pred_check_branch
        %123 = sbr.rel (%p120) target = $region12
      $region11: #{tpu_custom_call.1} parent=5 // pred_region
        %s124 = ssub.s32 %s16, 1
        // Predicated region
        $region13: #{tpu_custom_call.1} parent=11 // pred_check
          %p125 = pneg %p63
        $region14: #{tpu_custom_call.1} parent=11 // pred_check_branch
          %127 = sbr.rel (%p125) target = $region16
        $region15: #{tpu_custom_call.1} parent=11 // pred_region
          %s129 = ssub.s32 16384, 16384
          %130 = vsyncadd [#allocation6], %s129
          %s131 = sshll.u32 [#allocation5], 4
          %s132 = int_to_ptr.vmem [resolvable:$true] %s131
          %137 = dma.hbm_to_vmem [thread:$0]  %s1, 16384, %s132, [#allocation6], 1024, 1024, 64
        $region16: #{tpu_custom_call.1} parent=11 // pred_fallthru
          _
        // Predicated region
        $region17: #{tpu_custom_call.1} parent=11 // pred_check
          %p138 = pneg %p84
        $region18: #{tpu_custom_call.1} parent=11 // pred_check_branch
          %140 = sbr.rel (%p138) target = $region20
        $region19: #{tpu_custom_call.1} parent=11 // pred_region
          %s142 = ssub.s32 128, 128
          %143 = vsyncadd [#allocation6], %s142
          %s145 = sshll.u32 [#allocation7], 4
          %s146 = int_to_ptr.vmem [resolvable:$true] %s145
          %148 = dma.hbm_to_vmem [thread:$0]  %s2, 128, %s146, [#allocation6]
        $region20: #{tpu_custom_call.1} parent=11 // pred_fallthru
          _
      $region12: #{tpu_custom_call.1} parent=5 // pred_fallthru
        _
      %p149 = scmp.lt.s32.totalorder %s16, 2
      // Predicated region
      $region21: #{tpu_custom_call.1} parent=5 // pred_check
        %p150 = pneg %p149
      $region22: #{tpu_custom_call.1} parent=5 // pred_check_branch
        %152 = sbr.rel (%p150) target = $region24
      $region23: #{tpu_custom_call.1} parent=5 // pred_region
        // Predicated region
        $region25: #{tpu_custom_call.1} parent=23 // pred_check
          %p153 = pneg %p36
        $region26: #{tpu_custom_call.1} parent=23 // pred_check_branch
          %155 = sbr.rel (%p153) target = $region28
        $region27: #{tpu_custom_call.1} parent=23 // pred_region
          %s156 = sand.u32 %s26, 1
          %s157 = scalar_lea.sflag [#allocation3], %s156
          %s158 = sand.u32 %s26, 1
          %s159 = smul.addr %s158, 8
          %s160 = scalar_lea.vmem [#allocation2], %s159
          %s162 = ssub.s32 128, 128
          %163 = vsyncadd %s157, %s162
          %s164 = smul.addr %s16, 128
          %s165 = scalar_lea.hbm %s0, %s164
          %s167 = sshll.u32 %s160, 4
          %s168 = int_to_ptr.vmem [resolvable:$true] %s167
          %170 = dma.hbm_to_vmem [thread:$0]  %s165, 128, %s168, %s157
        $region28: #{tpu_custom_call.1} parent=23 // pred_fallthru
          _
      $region24: #{tpu_custom_call.1} parent=5 // pred_fallthru
        _
      %p171 = scmp.le.s32.totalorder 1, %s16
      %p172 = scmp.lt.s32.totalorder %s16, 3
      %p173 = pnand %p171, %p172
      %p174 = pneg %p173
      // Predicated region
      $region29: #{tpu_custom_call.1} parent=5 // pred_check
        _
      $region30: #{tpu_custom_call.1} parent=5 // pred_check_branch
        %176 = sbr.rel (%p173) target = $region32
      $region31: #{tpu_custom_call.1} parent=5 // pred_region
        %s177 = ssub.s32 %s16, 1
        %s178 = sand.u32 %s29, 1
        %s179 = scalar_lea.sflag [#allocation3], %s178
        %s180 = sand.u32 %s29, 1
        %s181 = smul.addr %s180, 8
        %s182 = scalar_lea.vmem [#allocation2], %s181
        // Predicated region
        $region33: #{tpu_custom_call.1} parent=31 // pred_check
          %p183 = pneg %p42
        $region34: #{tpu_custom_call.1} parent=31 // pred_check_branch
          %185 = sbr.rel (%p183) target = $region36
        $region35: #{tpu_custom_call.1} parent=31 // pred_region
          %186 = dma.done %s179, 128
        $region36: #{tpu_custom_call.1} parent=31 // pred_fallthru
          _
        // Predicated region
        $region37: #{tpu_custom_call.1} parent=31 // pred_check
          %p187 = pneg %p63
        $region38: #{tpu_custom_call.1} parent=31 // pred_check_branch
          %189 = sbr.rel (%p187) target = $region40
        $region39: #{tpu_custom_call.1} parent=31 // pred_region
          %190 = dma.done [#allocation6], 16384
        $region40: #{tpu_custom_call.1} parent=31 // pred_fallthru
          _
        // Predicated region
        $region41: #{tpu_custom_call.1} parent=31 // pred_check
          %p191 = pneg %p84
        $region42: #{tpu_custom_call.1} parent=31 // pred_check_branch
          %193 = sbr.rel (%p191) target = $region44
        $region43: #{tpu_custom_call.1} parent=31 // pred_region
          %194 = dma.done [#allocation6], 128
        $region44: #{tpu_custom_call.1} parent=31 // pred_fallthru
          _
        %s195 = sand.u32 %s29, 1
        %s196 = scalar_lea.sflag [#allocation3], %s195
        %s197 = sand.u32 %s29, 1
        %s198 = smul.addr %s197, 8
        %s199 = scalar_lea.vmem [#allocation2], %s198
        %p200 = pneg %p42
        %p201 = pneg %p39
        %p202 = pneg %p63
        %p203 = pneg %p60
        %p204 = pneg %p84
        %p205 = pneg %p81
        %p206 = pneg %p110
        %p207 = pneg %p107
        %s208 = sand.u32 %s97, 1
        %s209 = scalar_lea.sflag [#allocation4], %s208
        %s210 = sand.u32 %s97, 1
        %s211 = smul.addr %s210, 64
        %s212 = scalar_lea.vmem [#allocation8], %s211
        %v213 = vld [vmem:[%s182] sm:$0xff]
        %v214 = vld [vmem:[#allocation5] sm:$0xff]
        %v215 = vld [vmem:[#allocation5 + $0x8] sm:$0xff]
        %v216 = vld [vmem:[#allocation5 + $0x10] sm:$0xff]
        %v217 = vld [vmem:[#allocation5 + $0x18] sm:$0xff]
        %v218 = vld [vmem:[#allocation5 + $0x20] sm:$0xff]
        %v219 = vld [vmem:[#allocation5 + $0x28] sm:$0xff]
        %v220 = vld [vmem:[#allocation5 + $0x30] sm:$0xff]
        %v221 = vld [vmem:[#allocation5 + $0x38] sm:$0xff]
        %v222 = vld [vmem:[#allocation5 + $0x40] sm:$0xff]
        %v223 = vld [vmem:[#allocation5 + $0x48] sm:$0xff]
        %v224 = vld [vmem:[#allocation5 + $0x50] sm:$0xff]
        %v225 = vld [vmem:[#allocation5 + $0x58] sm:$0xff]
        %v226 = vld [vmem:[#allocation5 + $0x60] sm:$0xff]
        %v227 = vld [vmem:[#allocation5 + $0x68] sm:$0xff]
        %v228 = vld [vmem:[#allocation5 + $0x70] sm:$0xff]
        %v229 = vld [vmem:[#allocation5 + $0x78] sm:$0xff]
        %v230 = vld [vmem:[#allocation5 + $0x80] sm:$0xff]
        %v231 = vld [vmem:[#allocation5 + $0x88] sm:$0xff]
        %v232 = vld [vmem:[#allocation5 + $0x90] sm:$0xff]
        %v233 = vld [vmem:[#allocation5 + $0x98] sm:$0xff]
        %v234 = vld [vmem:[#allocation5 + $0xa0] sm:$0xff]
        %v235 = vld [vmem:[#allocation5 + $0xa8] sm:$0xff]
        %v236 = vld [vmem:[#allocation5 + $0xb0] sm:$0xff]
        %v237 = vld [vmem:[#allocation5 + $0xb8] sm:$0xff]
        %v238 = vld [vmem:[#allocation5 + $0xc0] sm:$0xff]
        %v239 = vld [vmem:[#allocation5 + $0xc8] sm:$0xff]
        %v240 = vld [vmem:[#allocation5 + $0xd0] sm:$0xff]
        %v241 = vld [vmem:[#allocation5 + $0xd8] sm:$0xff]
        %v242 = vld [vmem:[#allocation5 + $0xe0] sm:$0xff]
        %v243 = vld [vmem:[#allocation5 + $0xe8] sm:$0xff]
        %v244 = vld [vmem:[#allocation5 + $0xf0] sm:$0xff]
        %v245 = vld [vmem:[#allocation5 + $0xf8] sm:$0xff]
        %v246 = vld [vmem:[#allocation5 + $0x100] sm:$0xff]
        %v247 = vld [vmem:[#allocation5 + $0x108] sm:$0xff]
        %v248 = vld [vmem:[#allocation5 + $0x110] sm:$0xff]
        %v249 = vld [vmem:[#allocation5 + $0x118] sm:$0xff]
        %v250 = vld [vmem:[#allocation5 + $0x120] sm:$0xff]
        %v251 = vld [vmem:[#allocation5 + $0x128] sm:$0xff]
        %v252 = vld [vmem:[#allocation5 + $0x130] sm:$0xff]
        %v253 = vld [vmem:[#allocation5 + $0x138] sm:$0xff]
        %v254 = vld [vmem:[#allocation5 + $0x140] sm:$0xff]
        %v255 = vld [vmem:[#allocation5 + $0x148] sm:$0xff]
        %v256 = vld [vmem:[#allocation5 + $0x150] sm:$0xff]
        %v257 = vld [vmem:[#allocation5 + $0x158] sm:$0xff]
        %v258 = vld [vmem:[#allocation5 + $0x160] sm:$0xff]
        %v259 = vld [vmem:[#allocation5 + $0x168] sm:$0xff]
        %v260 = vld [vmem:[#allocation5 + $0x170] sm:$0xff]
        %v261 = vld [vmem:[#allocation5 + $0x178] sm:$0xff]
        %v262 = vld [vmem:[#allocation5 + $0x180] sm:$0xff]
        %v263 = vld [vmem:[#allocation5 + $0x188] sm:$0xff]
        %v264 = vld [vmem:[#allocation5 + $0x190] sm:$0xff]
        %v265 = vld [vmem:[#allocation5 + $0x198] sm:$0xff]
        %v266 = vld [vmem:[#allocation5 + $0x1a0] sm:$0xff]
        %v267 = vld [vmem:[#allocation5 + $0x1a8] sm:$0xff]
        %v268 = vld [vmem:[#allocation5 + $0x1b0] sm:$0xff]
        %v269 = vld [vmem:[#allocation5 + $0x1b8] sm:$0xff]
        %v270 = vld [vmem:[#allocation5 + $0x1c0] sm:$0xff]
        %v271 = vld [vmem:[#allocation5 + $0x1c8] sm:$0xff]
        %v272 = vld [vmem:[#allocation5 + $0x1d0] sm:$0xff]
        %v273 = vld [vmem:[#allocation5 + $0x1d8] sm:$0xff]
        %v274 = vld [vmem:[#allocation5 + $0x1e0] sm:$0xff]
        %v275 = vld [vmem:[#allocation5 + $0x1e8] sm:$0xff]
        %v276 = vld [vmem:[#allocation5 + $0x1f0] sm:$0xff]
        %v277 = vld [vmem:[#allocation5 + $0x1f8] sm:$0xff]
        %v278 = vld [vmem:[#allocation5 + $0x200] sm:$0xff]
        %v279 = vld [vmem:[#allocation5 + $0x208] sm:$0xff]
        %v280 = vld [vmem:[#allocation5 + $0x210] sm:$0xff]
        %v281 = vld [vmem:[#allocation5 + $0x218] sm:$0xff]
        %v282 = vld [vmem:[#allocation5 + $0x220] sm:$0xff]
        %v283 = vld [vmem:[#allocation5 + $0x228] sm:$0xff]
        %v284 = vld [vmem:[#allocation5 + $0x230] sm:$0xff]
        %v285 = vld [vmem:[#allocation5 + $0x238] sm:$0xff]
        %v286 = vld [vmem:[#allocation5 + $0x240] sm:$0xff]
        %v287 = vld [vmem:[#allocation5 + $0x248] sm:$0xff]
        %v288 = vld [vmem:[#allocation5 + $0x250] sm:$0xff]
        %v289 = vld [vmem:[#allocation5 + $0x258] sm:$0xff]
        %v290 = vld [vmem:[#allocation5 + $0x260] sm:$0xff]
        %v291 = vld [vmem:[#allocation5 + $0x268] sm:$0xff]
        %v292 = vld [vmem:[#allocation5 + $0x270] sm:$0xff]
        %v293 = vld [vmem:[#allocation5 + $0x278] sm:$0xff]
        %v294 = vld [vmem:[#allocation5 + $0x280] sm:$0xff]
        %v295 = vld [vmem:[#allocation5 + $0x288] sm:$0xff]
        %v296 = vld [vmem:[#allocation5 + $0x290] sm:$0xff]
        %v297 = vld [vmem:[#allocation5 + $0x298] sm:$0xff]
        %v298 = vld [vmem:[#allocation5 + $0x2a0] sm:$0xff]
        %v299 = vld [vmem:[#allocation5 + $0x2a8] sm:$0xff]
        %v300 = vld [vmem:[#allocation5 + $0x2b0] sm:$0xff]
        %v301 = vld [vmem:[#allocation5 + $0x2b8] sm:$0xff]
        %v302 = vld [vmem:[#allocation5 + $0x2c0] sm:$0xff]
        %v303 = vld [vmem:[#allocation5 + $0x2c8] sm:$0xff]
        %v304 = vld [vmem:[#allocation5 + $0x2d0] sm:$0xff]
        %v305 = vld [vmem:[#allocation5 + $0x2d8] sm:$0xff]
        %v306 = vld [vmem:[#allocation5 + $0x2e0] sm:$0xff]
        %v307 = vld [vmem:[#allocation5 + $0x2e8] sm:$0xff]
        %v308 = vld [vmem:[#allocation5 + $0x2f0] sm:$0xff]
        %v309 = vld [vmem:[#allocation5 + $0x2f8] sm:$0xff]
        %v310 = vld [vmem:[#allocation5 + $0x300] sm:$0xff]
        %v311 = vld [vmem:[#allocation5 + $0x308] sm:$0xff]
        %v312 = vld [vmem:[#allocation5 + $0x310] sm:$0xff]
        %v313 = vld [vmem:[#allocation5 + $0x318] sm:$0xff]
        %v314 = vld [vmem:[#allocation5 + $0x320] sm:$0xff]
        %v315 = vld [vmem:[#allocation5 + $0x328] sm:$0xff]
        %v316 = vld [vmem:[#allocation5 + $0x330] sm:$0xff]
        %v317 = vld [vmem:[#allocation5 + $0x338] sm:$0xff]
        %v318 = vld [vmem:[#allocation5 + $0x340] sm:$0xff]
        %v319 = vld [vmem:[#allocation5 + $0x348] sm:$0xff]
        %v320 = vld [vmem:[#allocation5 + $0x350] sm:$0xff]
        %v321 = vld [vmem:[#allocation5 + $0x358] sm:$0xff]
        %v322 = vld [vmem:[#allocation5 + $0x360] sm:$0xff]
        %v323 = vld [vmem:[#allocation5 + $0x368] sm:$0xff]
        %v324 = vld [vmem:[#allocation5 + $0x370] sm:$0xff]
        %v325 = vld [vmem:[#allocation5 + $0x378] sm:$0xff]
        %v326 = vld [vmem:[#allocation5 + $0x380] sm:$0xff]
        %v327 = vld [vmem:[#allocation5 + $0x388] sm:$0xff]
        %v328 = vld [vmem:[#allocation5 + $0x390] sm:$0xff]
        %v329 = vld [vmem:[#allocation5 + $0x398] sm:$0xff]
        %v330 = vld [vmem:[#allocation5 + $0x3a0] sm:$0xff]
        %v331 = vld [vmem:[#allocation5 + $0x3a8] sm:$0xff]
        %v332 = vld [vmem:[#allocation5 + $0x3b0] sm:$0xff]
        %v333 = vld [vmem:[#allocation5 + $0x3b8] sm:$0xff]
        %v334 = vld [vmem:[#allocation5 + $0x3c0] sm:$0xff]
        %v335 = vld [vmem:[#allocation5 + $0x3c8] sm:$0xff]
        %v336 = vld [vmem:[#allocation5 + $0x3d0] sm:$0xff]
        %v337 = vld [vmem:[#allocation5 + $0x3d8] sm:$0xff]
        %v338 = vld [vmem:[#allocation5 + $0x3e0] sm:$0xff]
        %v339 = vld [vmem:[#allocation5 + $0x3e8] sm:$0xff]
        %v340 = vld [vmem:[#allocation5 + $0x3f0] sm:$0xff]
        %v341 = vld [vmem:[#allocation5 + $0x3f8] sm:$0xff]
        %v342 = vld [vmem:[#allocation7] sm:$0xff]
        %v344 = vlaneseq
        %v345 = vshrl.u32 %v344, 7
        %v346 = vsub.s32 0, %v345
        %v347 = vrot.slane %v342, %v346
        %v348 = vlaneseq
        %v349 = vshrl.u32 %v348, 7
        %v350 = vsub.s32 1, %v349
        %v351 = vrot.slane %v342, %v350
        %v352 = vlaneseq
        %v353 = vshrl.u32 %v352, 7
        %v354 = vsub.s32 2, %v353
        %v355 = vrot.slane %v342, %v354
        %v356 = vlaneseq
        %v357 = vshrl.u32 %v356, 7
        %v358 = vsub.s32 3, %v357
        %v359 = vrot.slane %v342, %v358
        %v360 = vlaneseq
        %v361 = vshrl.u32 %v360, 7
        %v362 = vsub.s32 4, %v361
        %v363 = vrot.slane %v342, %v362
        %v364 = vlaneseq
        %v365 = vshrl.u32 %v364, 7
        %v366 = vsub.s32 5, %v365
        %v367 = vrot.slane %v342, %v366
        %v368 = vlaneseq
        %v369 = vshrl.u32 %v368, 7
        %v370 = vsub.s32 6, %v369
        %v371 = vrot.slane %v342, %v370
        %v372 = vlaneseq
        %v373 = vshrl.u32 %v372, 7
        %v374 = vsub.s32 7, %v373
        %v375 = vrot.slane %v342, %v374
        %384 = vmatprep.subr.mxu0 %v215
        %385 = vmatpush1.msra.mxu0 %v214
        %386 = vmatprep.subr.mxu0 %v223
        %387 = vmatpush1.msra.mxu0 %v222
        %388 = vmatprep.subr.mxu0 %v231
        %389 = vmatpush1.msra.mxu0 %v230
        %390 = vmatprep.subr.mxu0 %v239
        %391 = vmatpush1.msra.mxu0 %v238
        %392 = vmatprep.subr.mxu0 %v247
        %393 = vmatpush1.msra.mxu0 %v246
        %394 = vmatprep.subr.mxu0 %v255
        %395 = vmatpush1.msra.mxu0 %v254
        %396 = vmatprep.subr.mxu0 %v263
        %397 = vmatpush1.msra.mxu0 %v262
        %398 = vmatprep.subr.mxu0 %v271
        %399 = vmatpush1.msra.mxu0 %v270
        %400 = vmatprep.subr.mxu0 %v279
        %401 = vmatpush1.msra.mxu0 %v278
        %402 = vmatprep.subr.mxu0 %v287
        %403 = vmatpush1.msra.mxu0 %v286
        %404 = vmatprep.subr.mxu0 %v295
        %405 = vmatpush1.msra.mxu0 %v294
        %406 = vmatprep.subr.mxu0 %v303
        %407 = vmatpush1.msra.mxu0 %v302
        %408 = vmatprep.subr.mxu0 %v311
        %409 = vmatpush1.msra.mxu0 %v310
        %410 = vmatprep.subr.mxu0 %v319
        %411 = vmatpush1.msra.mxu0 %v318
        %412 = vmatprep.subr.mxu0 %v327
        %413 = vmatpush1.msra.mxu0 %v326
        %414 = vmatprep.subr.mxu0 %v335
        %415 = vmatpush1.msra.mxu0 %v334
        %416 = vmatprep.subr.mxu0 0.0
        %417 = vmatpush1.msra.mxu0 0.0
        %418 = vmatprep.subr.mxu0 0.0
        %419 = vmatpush1.msra.mxu0 0.0
        %420 = vmatprep.subr.mxu0 0.0
        %421 = vmatpush1.msra.mxu0 0.0
        %422 = vmatprep.subr.mxu0 0.0
        %423 = vmatpush1.msra.mxu0 0.0
        %424 = vmatprep.subr.mxu0 0.0
        %425 = vmatpush1.msra.mxu0 0.0
        %426 = vmatprep.subr.mxu0 0.0
        %427 = vmatpush1.msra.mxu0 0.0
        %428 = vmatprep.subr.mxu0 0.0
        %429 = vmatpush1.msra.mxu0 0.0
        %430 = vmatprep.subr.mxu0 0.0
        %431 = vmatpush1.msra.mxu0 0.0
        %432 = vmatprep.subr.mxu0 0.0
        %433 = vmatpush1.msra.mxu0 0.0
        %434 = vmatprep.subr.mxu0 0.0
        %435 = vmatpush1.msra.mxu0 0.0
        %436 = vmatprep.subr.mxu0 0.0
        %437 = vmatpush1.msra.mxu0 0.0
        %438 = vmatprep.subr.mxu0 0.0
        %439 = vmatpush1.msra.mxu0 0.0
        %440 = vmatprep.subr.mxu0 0.0
        %441 = vmatpush1.msra.mxu0 0.0
        %442 = vmatprep.subr.mxu0 0.0
        %443 = vmatpush1.msra.mxu0 0.0
        %444 = vmatprep.subr.mxu0 0.0
        %445 = vmatpush1.msra.mxu0 0.0
        %446 = vmatprep.subr.mxu0 0.0
        %447 = vmatpush1.msra.mxu0 0.0
        %448 = vmatprep.mubr.f32.mxu0 0.0
        %449 = vmatmul.mubr.f32.gmra.mrb[0].mxu0 %v213
        %v450 = vpop.f32.mrb[0].mxu0
        %v451 = vadd.f32 %v347, %v450
        %v452 = vpop.f32.mrb[0].mxu0
        %v453 = vadd.f32 %v351, %v452
        %454 = vdwg.mxu0
        %455 = vmatprep.subr.mxu0 %v217
        %456 = vmatpush1.msra.mxu0 %v216
        %457 = vmatprep.subr.mxu0 %v225
        %458 = vmatpush1.msra.mxu0 %v224
        %459 = vmatprep.subr.mxu0 %v233
        %460 = vmatpush1.msra.mxu0 %v232
        %461 = vmatprep.subr.mxu0 %v241
        %462 = vmatpush1.msra.mxu0 %v240
        %463 = vmatprep.subr.mxu0 %v249
        %464 = vmatpush1.msra.mxu0 %v248
        %465 = vmatprep.subr.mxu0 %v257
        %466 = vmatpush1.msra.mxu0 %v256
        %467 = vmatprep.subr.mxu0 %v265
        %468 = vmatpush1.msra.mxu0 %v264
        %469 = vmatprep.subr.mxu0 %v273
        %470 = vmatpush1.msra.mxu0 %v272
        %471 = vmatprep.subr.mxu0 %v281
        %472 = vmatpush1.msra.mxu0 %v280
        %473 = vmatprep.subr.mxu0 %v289
        %474 = vmatpush1.msra.mxu0 %v288
        %475 = vmatprep.subr.mxu0 %v297
        %476 = vmatpush1.msra.mxu0 %v296
        %477 = vmatprep.subr.mxu0 %v305
        %478 = vmatpush1.msra.mxu0 %v304
        %479 = vmatprep.subr.mxu0 %v313
        %480 = vmatpush1.msra.mxu0 %v312
        %481 = vmatprep.subr.mxu0 %v321
        %482 = vmatpush1.msra.mxu0 %v320
        %483 = vmatprep.subr.mxu0 %v329
        %484 = vmatpush1.msra.mxu0 %v328
        %485 = vmatprep.subr.mxu0 %v337
        %486 = vmatpush1.msra.mxu0 %v336
        %487 = vmatprep.subr.mxu0 0.0
        %488 = vmatpush1.msra.mxu0 0.0
        %489 = vmatprep.subr.mxu0 0.0
        %490 = vmatpush1.msra.mxu0 0.0
        %491 = vmatprep.subr.mxu0 0.0
        %492 = vmatpush1.msra.mxu0 0.0
        %493 = vmatprep.subr.mxu0 0.0
        %494 = vmatpush1.msra.mxu0 0.0
        %495 = vmatprep.subr.mxu0 0.0
        %496 = vmatpush1.msra.mxu0 0.0
        %497 = vmatprep.subr.mxu0 0.0
        %498 = vmatpush1.msra.mxu0 0.0
        %499 = vmatprep.subr.mxu0 0.0
        %500 = vmatpush1.msra.mxu0 0.0
        %501 = vmatprep.subr.mxu0 0.0
        %502 = vmatpush1.msra.mxu0 0.0
        %503 = vmatprep.subr.mxu0 0.0
        %504 = vmatpush1.msra.mxu0 0.0
        %505 = vmatprep.subr.mxu0 0.0
        %506 = vmatpush1.msra.mxu0 0.0
        %507 = vmatprep.subr.mxu0 0.0
        %508 = vmatpush1.msra.mxu0 0.0
        %509 = vmatprep.subr.mxu0 0.0
        %510 = vmatpush1.msra.mxu0 0.0
        %511 = vmatprep.subr.mxu0 0.0
        %512 = vmatpush1.msra.mxu0 0.0
        %513 = vmatprep.subr.mxu0 0.0
        %514 = vmatpush1.msra.mxu0 0.0
        %515 = vmatprep.subr.mxu0 0.0
        %516 = vmatpush1.msra.mxu0 0.0
        %517 = vmatprep.subr.mxu0 0.0
        %518 = vmatpush1.msra.mxu0 0.0
        %519 = vmatprep.mubr.f32.mxu0 0.0
        %520 = vmatmul.mubr.f32.gmra.mrb[0].mxu0 %v213
        %v521 = vpop.f32.mrb[0].mxu0
        %v522 = vadd.f32 %v355, %v521
        %v523 = vpop.f32.mrb[0].mxu0
        %v524 = vadd.f32 %v359, %v523
        %525 = vdwg.mxu0
        %526 = vmatprep.subr.mxu0 %v219
        %527 = vmatpush1.msra.mxu0 %v218
        %528 = vmatprep.subr.mxu0 %v227
        %529 = vmatpush1.msra.mxu0 %v226
        %530 = vmatprep.subr.mxu0 %v235
        %531 = vmatpush1.msra.mxu0 %v234
        %532 = vmatprep.subr.mxu0 %v243
        %533 = vmatpush1.msra.mxu0 %v242
        %534 = vmatprep.subr.mxu0 %v251
        %535 = vmatpush1.msra.mxu0 %v250
        %536 = vmatprep.subr.mxu0 %v259
        %537 = vmatpush1.msra.mxu0 %v258
        %538 = vmatprep.subr.mxu0 %v267
        %539 = vmatpush1.msra.mxu0 %v266
        %540 = vmatprep.subr.mxu0 %v275
        %541 = vmatpush1.msra.mxu0 %v274
        %542 = vmatprep.subr.mxu0 %v283
        %543 = vmatpush1.msra.mxu0 %v282
        %544 = vmatprep.subr.mxu0 %v291
        %545 = vmatpush1.msra.mxu0 %v290
        %546 = vmatprep.subr.mxu0 %v299
        %547 = vmatpush1.msra.mxu0 %v298
        %548 = vmatprep.subr.mxu0 %v307
        %549 = vmatpush1.msra.mxu0 %v306
        %550 = vmatprep.subr.mxu0 %v315
        %551 = vmatpush1.msra.mxu0 %v314
        %552 = vmatprep.subr.mxu0 %v323
        %553 = vmatpush1.msra.mxu0 %v322
        %554 = vmatprep.subr.mxu0 %v331
        %555 = vmatpush1.msra.mxu0 %v330
        %556 = vmatprep.subr.mxu0 %v339
        %557 = vmatpush1.msra.mxu0 %v338
        %558 = vmatprep.subr.mxu0 0.0
        %559 = vmatpush1.msra.mxu0 0.0
        %560 = vmatprep.subr.mxu0 0.0
        %561 = vmatpush1.msra.mxu0 0.0
        %562 = vmatprep.subr.mxu0 0.0
        %563 = vmatpush1.msra.mxu0 0.0
        %564 = vmatprep.subr.mxu0 0.0
        %565 = vmatpush1.msra.mxu0 0.0
        %566 = vmatprep.subr.mxu0 0.0
        %567 = vmatpush1.msra.mxu0 0.0
        %568 = vmatprep.subr.mxu0 0.0
        %569 = vmatpush1.msra.mxu0 0.0
        %570 = vmatprep.subr.mxu0 0.0
        %571 = vmatpush1.msra.mxu0 0.0
        %572 = vmatprep.subr.mxu0 0.0
        %573 = vmatpush1.msra.mxu0 0.0
        %574 = vmatprep.subr.mxu0 0.0
        %575 = vmatpush1.msra.mxu0 0.0
        %576 = vmatprep.subr.mxu0 0.0
        %577 = vmatpush1.msra.mxu0 0.0
        %578 = vmatprep.subr.mxu0 0.0
        %579 = vmatpush1.msra.mxu0 0.0
        %580 = vmatprep.subr.mxu0 0.0
        %581 = vmatpush1.msra.mxu0 0.0
        %582 = vmatprep.subr.mxu0 0.0
        %583 = vmatpush1.msra.mxu0 0.0
        %584 = vmatprep.subr.mxu0 0.0
        %585 = vmatpush1.msra.mxu0 0.0
        %586 = vmatprep.subr.mxu0 0.0
        %587 = vmatpush1.msra.mxu0 0.0
        %588 = vmatprep.subr.mxu0 0.0
        %589 = vmatpush1.msra.mxu0 0.0
        %590 = vmatprep.mubr.f32.mxu0 0.0
        %591 = vmatmul.mubr.f32.gmra.mrb[0].mxu0 %v213
        %v592 = vpop.f32.mrb[0].mxu0
        %v593 = vadd.f32 %v363, %v592
        %v594 = vpop.f32.mrb[0].mxu0
        %v595 = vadd.f32 %v367, %v594
        %596 = vdwg.mxu0
        %597 = vmatprep.subr.mxu0 %v221
        %598 = vmatpush1.msra.mxu0 %v220
        %599 = vmatprep.subr.mxu0 %v229
        %600 = vmatpush1.msra.mxu0 %v228
        %601 = vmatprep.subr.mxu0 %v237
        %602 = vmatpush1.msra.mxu0 %v236
        %603 = vmatprep.subr.mxu0 %v245
        %604 = vmatpush1.msra.mxu0 %v244
        %605 = vmatprep.subr.mxu0 %v253
        %606 = vmatpush1.msra.mxu0 %v252
        %607 = vmatprep.subr.mxu0 %v261
        %608 = vmatpush1.msra.mxu0 %v260
        %609 = vmatprep.subr.mxu0 %v269
        %610 = vmatpush1.msra.mxu0 %v268
        %611 = vmatprep.subr.mxu0 %v277
        %612 = vmatpush1.msra.mxu0 %v276
        %613 = vmatprep.subr.mxu0 %v285
        %614 = vmatpush1.msra.mxu0 %v284
        %615 = vmatprep.subr.mxu0 %v293
        %616 = vmatpush1.msra.mxu0 %v292
        %617 = vmatprep.subr.mxu0 %v301
        %618 = vmatpush1.msra.mxu0 %v300
        %619 = vmatprep.subr.mxu0 %v309
        %620 = vmatpush1.msra.mxu0 %v308
        %621 = vmatprep.subr.mxu0 %v317
        %622 = vmatpush1.msra.mxu0 %v316
        %623 = vmatprep.subr.mxu0 %v325
        %624 = vmatpush1.msra.mxu0 %v324
        %625 = vmatprep.subr.mxu0 %v333
        %626 = vmatpush1.msra.mxu0 %v332
        %627 = vmatprep.subr.mxu0 %v341
        %628 = vmatpush1.msra.mxu0 %v340
        %629 = vmatprep.subr.mxu0 0.0
        %630 = vmatpush1.msra.mxu0 0.0
        %631 = vmatprep.subr.mxu0 0.0
        %632 = vmatpush1.msra.mxu0 0.0
        %633 = vmatprep.subr.mxu0 0.0
        %634 = vmatpush1.msra.mxu0 0.0
        %635 = vmatprep.subr.mxu0 0.0
        %636 = vmatpush1.msra.mxu0 0.0
        %637 = vmatprep.subr.mxu0 0.0
        %638 = vmatpush1.msra.mxu0 0.0
        %639 = vmatprep.subr.mxu0 0.0
        %640 = vmatpush1.msra.mxu0 0.0
        %641 = vmatprep.subr.mxu0 0.0
        %642 = vmatpush1.msra.mxu0 0.0
        %643 = vmatprep.subr.mxu0 0.0
        %644 = vmatpush1.msra.mxu0 0.0
        %645 = vmatprep.subr.mxu0 0.0
        %646 = vmatpush1.msra.mxu0 0.0
        %647 = vmatprep.subr.mxu0 0.0
        %648 = vmatpush1.msra.mxu0 0.0
        %649 = vmatprep.subr.mxu0 0.0
        %650 = vmatpush1.msra.mxu0 0.0
        %651 = vmatprep.subr.mxu0 0.0
        %652 = vmatpush1.msra.mxu0 0.0
        %653 = vmatprep.subr.mxu0 0.0
        %654 = vmatpush1.msra.mxu0 0.0
        %655 = vmatprep.subr.mxu0 0.0
        %656 = vmatpush1.msra.mxu0 0.0
        %657 = vmatprep.subr.mxu0 0.0
        %658 = vmatpush1.msra.mxu0 0.0
        %659 = vmatprep.subr.mxu0 0.0
        %660 = vmatpush1.msra.mxu0 0.0
        %661 = vmatprep.mubr.f32.mxu0 0.0
        %662 = vmatmul.mubr.f32.gmra.mrb[0].mxu0 %v213
        %v663 = vpop.f32.mrb[0].mxu0
        %v664 = vadd.f32 %v371, %v663
        %v665 = vpop.f32.mrb[0].mxu0
        %v666 = vadd.f32 %v375, %v665
        %667 = vdwg.mxu0
        %668 = vst [vmem:[%s212] sm:$0xff] %v451
        %669 = vst [vmem:[%s212 + $0x8] sm:$0xff] %v453
        %670 = vst [vmem:[%s212 + $0x10] sm:$0xff] %v522
        %671 = vst [vmem:[%s212 + $0x18] sm:$0xff] %v524
        %672 = vst [vmem:[%s212 + $0x20] sm:$0xff] %v593
        %673 = vst [vmem:[%s212 + $0x28] sm:$0xff] %v595
        %674 = vst [vmem:[%s212 + $0x30] sm:$0xff] %v664
        %675 = vst [vmem:[%s212 + $0x38] sm:$0xff] %v666
        %s676 = sand.u32 %s97, 1
        %s677 = scalar_lea.sflag [#allocation4], %s676
        %s678 = sand.u32 %s97, 1
        %s679 = smul.addr %s678, 64
        %s680 = scalar_lea.vmem [#allocation8], %s679
        // Predicated region
        $region45: #{tpu_custom_call.1} parent=31 // pred_check
          %p681 = pneg %p107
        $region46: #{tpu_custom_call.1} parent=31 // pred_check_branch
          %683 = sbr.rel (%p681) target = $region48
        $region47: #{tpu_custom_call.1} parent=31 // pred_region
          %s685 = ssub.s32 1024, 1024
          %686 = vsyncadd %s677, %s685
          %s687 = smul.addr %s21, 8
          %s688 = smul.addr %s687, 128
          %s689 = scalar_lea.hbm %s3, %s688
          %s691 = sshll.u32 %s680, 4
          %s692 = int_to_ptr.vmem [resolvable:$true] %s691
          %694 = dma.vmem_to_hbm [thread:$0]  %s692, 1024, %s689, %s677
        $region48: #{tpu_custom_call.1} parent=31 // pred_fallthru
          _
      $region32: #{tpu_custom_call.1} parent=5 // pred_fallthru
        _
      %p695 = scmp.le.s32.totalorder 2, %s16
      // Predicated region
      $region49: #{tpu_custom_call.1} parent=5 // pred_check
        %p696 = pneg %p695
      $region50: #{tpu_custom_call.1} parent=5 // pred_check_branch
        %698 = sbr.rel (%p696) target = $region52
      $region51: #{tpu_custom_call.1} parent=5 // pred_region
        %s699 = ssub.s32 %s16, 2
        // Predicated region
        $region53: #{tpu_custom_call.1} parent=51 // pred_check
          %p700 = pneg %p113
        $region54: #{tpu_custom_call.1} parent=51 // pred_check_branch
          %702 = sbr.rel (%p700) target = $region56
        $region55: #{tpu_custom_call.1} parent=51 // pred_region
          %s703 = sand.u32 %s98, 1
          %s704 = scalar_lea.sflag [#allocation4], %s703
          %s705 = sand.u32 %s98, 1
          %s706 = smul.addr %s705, 64
          %s707 = scalar_lea.vmem [#allocation8], %s706
          %708 = dma.done %s704, 1024
        $region56: #{tpu_custom_call.1} parent=51 // pred_fallthru
          _
      $region52: #{tpu_custom_call.1} parent=5 // pred_fallthru
        _
    $region6: #{tpu_custom_call.1} parent=1 // loop_footer
      %s20 = sadd.s32 1, %s16
    $region7: #{tpu_custom_call.1} parent=1 // loop_footer_branch
      %15 = sbr.rel target = $region3
    $region8: #{tpu_custom_call.1} parent=1 // loop_exit
      _
    %709 = vsyncpa [#allocation3], 1
    %s710 = scalar_lea.sflag [#allocation3], 1
    %711 = vsyncpa %s710, 1
    %712 = vsyncpa [#allocation6], 1
    %713 = vsyncpa [#allocation4], 1
    %s714 = scalar_lea.sflag [#allocation4], 1
    %715 = vsyncpa %s714, 1

</llo_original>
